<compile_context>
chip_gen: v7x
topology: tpu7x:2x2x1
jax: 0.10.0
libtpu: 0.0.40
codegen_flags: <defaults>
</compile_context>

<pallas_src>
import functools

import jax
import jax.numpy as jnp
from jax.experimental import pallas as pl
from jax.experimental.pallas import tpu as pltpu


def _wtfd_kernel(x_ref, w1s_ref, b1s_ref, wh_ref, bh_ref, yl_ref, yh_ref, *, co, cop):
    x = x_ref[...]                                           # (4C, tn), compute dtype

    # Fused stage 1: [yL_pre ; h_pre] = relu(W1s @ x + b1s), f32 accumulation.
    p = jnp.dot(w1s_ref[...], x, preferred_element_type=jnp.float32) + b1s_ref[...]
    p = jnp.maximum(p, 0.0)

    # Low-frequency branch output (rows [0, co) — sublane-aligned start).
    yl_ref[...] = p[:co].astype(yl_ref.dtype)

    # High-frequency branch: relu(WH @ h + bH), h starts at sublane-aligned row cop.
    h = p[cop:].astype(x.dtype)
    yh = jnp.dot(wh_ref[...], h, preferred_element_type=jnp.float32) + bh_ref[...]
    yh_ref[...] = jnp.maximum(yh, 0.0).astype(yh_ref.dtype)


def _round_up(n, m):
    return ((n + m - 1) // m) * m


def _fold_and_pack(params, compute_dtype):
    """Fold Haar DWT + BN into the 1x1-conv weights and pack stage-1 into one matmul.

    Kernel input row layout is x4c = [a; b; c; d] (corner order (0,0),(0,1),(1,0),(1,1)),
    each block of C channels.  Haar J=1, mode='zero' on even-sized inputs:
        LL = .5(a+b+c+d), h0 = .5(a+b-c-d), h1 = .5(a-b+c-d), h2 = .5(a-b-c+d)
    Returns (w1s, b1s, whf, bhf, Cop) with weights in out-channel-first orientation.
    """
    w1, b1, wl, bl, wh, bh = params
    C = wl.shape[0]
    Co = wl.shape[1]
    Cop = _round_up(Co, 8)                                  # sublane-aligned split point

    eye = jnp.eye(C, dtype=jnp.float32)
    m_ll = 0.5 * jnp.kron(jnp.array([[1., 1., 1., 1.]], jnp.float32), eye)    # (C, 4C)
    m_h = 0.5 * jnp.kron(jnp.array([[1., 1., -1., -1.],
                                    [1., -1., 1., -1.],
                                    [1., -1., -1., 1.]], jnp.float32), eye)   # (3C, 4C)

    wlf = wl.T @ m_ll                                        # (Co, 4C)
    w1f = w1.T @ m_h                                         # (C,  4C)

    # Pad the low-frequency rows to a multiple of 8 so the h slice is vreg-aligned.
    wlf_p = jnp.pad(wlf, ((0, Cop - Co), (0, 0)))
    blf_p = jnp.pad(bl.reshape(-1, 1), ((0, Cop - Co), (0, 0)))

    w1s = jnp.concatenate([wlf_p, w1f], axis=0).astype(compute_dtype)   # (Cop+C, 4C)
    b1s = jnp.concatenate([blf_p, b1.reshape(-1, 1)], axis=0)           # (Cop+C, 1) f32
    whf = wh.T.astype(compute_dtype)                                    # (Co, C)
    bhf = bh.reshape(-1, 1)                                             # (Co, 1) f32
    return w1s, b1s, whf, bhf, Cop


def _pick_tile(n_b, batch, tile_max, bytes_per_lane, vmem_budget=24 << 20):
    """Lane tile: full per-batch extent if small, else a multiple of 128 within budget.

    Prefers divisors of n_b (no padding / no output slice) and an even total grid
    step count (v7x megacore balance).
    """
    cap = max(128, min(tile_max, vmem_budget // max(bytes_per_lane, 1)))
    if n_b <= cap:
        return n_b                                           # one full-extent block
    cap = (cap // 128) * 128
    divs = [k for k in range(cap, 127, -128) if n_b % k == 0]
    even = [k for k in divs if (batch * (n_b // k)) % 2 == 0]
    if even:
        return even[0]
    if divs:
        return divs[0]
    steps = -(-n_b // cap)
    if (batch * steps) % 2:
        steps += 1
    return _round_up(-(-n_b // steps), 128)


def wtfd_forward(x, params, *, tile_n=8192, compute_dtype=jnp.bfloat16, out_dtype=None):
    """x: (B, C, H, W) float32.  Returns (yL, yH), each (B, out_ch, H//2, W//2)."""
    B, C, H, W = x.shape
    assert H % 2 == 0 and W % 2 == 0
    H2, W2 = H // 2, W // 2
    C4 = 4 * C
    Co = params[2].shape[1]
    Nb = H2 * W2
    out_dtype = compute_dtype if out_dtype is None else out_dtype

    w1s, b1s, whf, bhf, Cop = _fold_and_pack(params, compute_dtype)

    # Single fused de-interleave + downcast: (B,C,H,W) f32 -> (B, 4C, H2*W2) bf16.
    # Corner order a,b,c,d on the 4C axis; pixels (lane axis) ordered (H2, W2) per batch.
    xr = x.reshape(B, C, H2, 2, W2, 2)
    x4c = jnp.transpose(xr, (0, 3, 5, 1, 2, 4)).reshape(B, C4, Nb).astype(compute_dtype)

    in_it = jnp.dtype(compute_dtype).itemsize
    out_it = jnp.dtype(out_dtype).itemsize
    # Per-lane VMEM cost: double-buffered (x + 2 outputs) blocks + f32 stage-1 interm.
    bytes_per_lane = 2 * (C4 * in_it + 2 * Co * out_it) + (Cop + C) * 4

    tn = _pick_tile(Nb, B, tile_n, bytes_per_lane)
    Npb = _round_up(Nb, tn)
    if Npb != Nb:
        x4c = jnp.pad(x4c, ((0, 0), (0, 0), (0, Npb - Nb)))
    steps = Npb // tn
    grid = (B, steps)

    x_spec = pl.BlockSpec((None, C4, tn), lambda b, i: (b, 0, i))
    out_spec = pl.BlockSpec((None, Co, tn), lambda b, i: (b, 0, i))
    wspec = lambda a: pl.BlockSpec(a.shape, lambda b, i: (0, 0))

    kernel = functools.partial(_wtfd_kernel, co=Co, cop=Cop)

    weight_bytes = ((Cop + C) * C4 + Co * C) * in_it + (Cop + C + Co) * 4
    cost = pl.CostEstimate(
        flops=int(2 * B * Npb * ((Cop + C) * C4 + Co * C)),
        transcendentals=0,
        bytes_accessed=int(B * Npb * (C4 * in_it + 2 * Co * out_it) + weight_bytes),
    )

    step_bytes = tn * (C4 * in_it + 2 * Co * out_it)
    vmem_limit = int(min(max(2 * step_bytes + tn * (Cop + C) * 4 + weight_bytes
                             + (4 << 20), 32 << 20), 48 << 20))

    yl_t, yh_t = pl.pallas_call(
        kernel,
        out_shape=(jax.ShapeDtypeStruct((B, Co, Npb), out_dtype),
                   jax.ShapeDtypeStruct((B, Co, Npb), out_dtype)),
        grid_spec=pltpu.PrefetchScalarGridSpec(
            num_scalar_prefetch=0,
            grid=grid,
            in_specs=[x_spec, wspec(w1s), wspec(b1s), wspec(whf), wspec(bhf)],
            out_specs=[out_spec, out_spec]),
        compiler_params=pltpu.CompilerParams(
            dimension_semantics=("parallel", "parallel"),
            vmem_limit_bytes=vmem_limit),
        cost_estimate=cost,
    )(x4c, w1s, b1s, whf, bhf)

    if Npb != Nb:
        # Padded tail columns hold relu(bias) garbage; slice them off before use.
        yl_t = yl_t[:, :, :Nb]
        yh_t = yh_t[:, :, :Nb]
    # Per-batch pixel ordering makes the NCHW output a free reshape (no transpose).
    yl = yl_t.reshape(B, Co, H2, W2)
    yh = yh_t.reshape(B, Co, H2, W2)
    return yl, yh


def make_params(in_ch, out_ch, key):
    """Deterministic init; 1x1 conv weights + BN folded to (Cin, Cout) matmul weights."""
    ks = jax.random.split(key, 6)

    def conv_init(k, cin, cout):
        bound = 1.0 / (cin ** 0.5)
        kw, kb = jax.random.split(k)
        w = jax.random.uniform(kw, (cout, cin), jnp.float32, -bound, bound)
        bias = jax.random.uniform(kb, (cout,), jnp.float32, -bound, bound)
        return w, bias

    def bn_init(k, c):
        k1, k2, k3, k4 = jax.random.split(k, 4)
        gamma = 1.0 + 0.1 * jax.random.normal(k1, (c,), jnp.float32)
        beta = 0.1 * jax.random.normal(k2, (c,), jnp.float32)
        mean = 0.1 * jax.random.normal(k3, (c,), jnp.float32)
        var = jnp.abs(1.0 + 0.1 * jax.random.normal(k4, (c,), jnp.float32))
        return gamma, beta, mean, var

    def fold(w, bias, bn, eps=1e-5):
        gamma, beta, mean, var = bn
        scale = gamma / jnp.sqrt(var + eps)
        wf = w * scale[:, None]                       # (Cout, Cin)
        bf = (bias - mean) * scale + beta             # (Cout,)
        return wf.T, bf.reshape(1, -1)                # (Cin, Cout), (1, Cout)

    w1, b1 = conv_init(ks[0], 3 * in_ch, in_ch)
    bn1 = bn_init(ks[1], in_ch)
    wl, bl = conv_init(ks[2], in_ch, out_ch)
    bnl = bn_init(ks[3], out_ch)
    wh, bh = conv_init(ks[4], in_ch, out_ch)
    bnh = bn_init(ks[5], out_ch)

    w1f, b1f = fold(w1, b1, bn1)
    wlf, blf = fold(wl, bl, bnl)
    whf, bhf = fold(wh, bh, bnh)
    return (w1f, b1f, wlf, blf, whf, bhf)


def wtfd_ref(x, params):
    """Pure-JAX reference of the same forward (Haar DWT + folded conv/BN/ReLU)."""
    w1, b1, wl, bl, wh, bh = params
    a = x[:, :, 0::2, 0::2]
    b_ = x[:, :, 0::2, 1::2]
    c = x[:, :, 1::2, 0::2]
    d = x[:, :, 1::2, 1::2]
    ll = (a + b_ + c + d) * 0.5
    h0 = (a + b_ - c - d) * 0.5
    h1 = (a - b_ + c - d) * 0.5
    h2 = (a - b_ - c + d) * 0.5
    yh_in = jnp.concatenate([h0, h1, h2], axis=1)

    def conv1x1_relu(t, w, bias):
        out = jnp.einsum('bchw,ck->bkhw', t, w) + bias.reshape(1, -1, 1, 1)
        return jnp.maximum(out, 0.0)

    yh_mid = conv1x1_relu(yh_in, w1, b1)
    yl = conv1x1_relu(ll, wl, bl)
    yh = conv1x1_relu(yh_mid, wh, bh)
    return yl, yh


if __name__ == "__main__":
    in_ch, out_ch = 4, 8
    B, H, W = 2, 16, 16

    key = jax.random.PRNGKey(0)
    kx, kp = jax.random.split(key)
    x = jax.random.normal(kx, (B, in_ch, H, W), dtype=jnp.float32)
    params = make_params(in_ch, out_ch, kp)

    yl_ref, yh_ref = wtfd_ref(x, params)

    # Exact path (f32 activations/weights/outputs): tight check against the reference.
    yl32, yh32 = wtfd_forward(x, params, compute_dtype=jnp.float32)
    yl32, yh32 = jax.block_until_ready((yl32, yh32))
    assert yl32.shape == (B, out_ch, H // 2, W // 2)
    assert yh32.shape == (B, out_ch, H // 2, W // 2)
    assert jnp.allclose(yl32, yl_ref, rtol=1e-5, atol=1e-5)
    assert jnp.allclose(yh32, yh_ref, rtol=1e-5, atol=1e-5)

    # Fast path (default: bf16 activations/weights/outputs, f32 MXU accumulation).
    yl, yh = wtfd_forward(x, params)
    yl, yh = jax.block_until_ready((yl, yh))
    assert yl.shape == (B, out_ch, H // 2, W // 2)
    assert yh.shape == (B, out_ch, H // 2, W // 2)
    assert jnp.allclose(yl.astype(jnp.float32), yl_ref, rtol=5e-2, atol=5e-2)
    assert jnp.allclose(yh.astype(jnp.float32), yh_ref, rtol=5e-2, atol=5e-2)

    print("KERNEL_OK")
</pallas_src>

<mosaic_0001>
module attributes {stable_mosaic.version = 11 : i64} {
  func.func @_wtfd_kernel(%arg0: i32, %arg1: i32, %arg2: memref<1x16x64xf32, #tpu.memory_space<vmem>>, %arg3: memref<12x16xf32, #tpu.memory_space<vmem>>, %arg4: memref<12x1xf32, #tpu.memory_space<vmem>>, %arg5: memref<8x4xf32, #tpu.memory_space<vmem>>, %arg6: memref<8x1xf32, #tpu.memory_space<vmem>>, %arg7: memref<1x8x64xf32, #tpu.memory_space<vmem>>, %arg8: memref<1x8x64xf32, #tpu.memory_space<vmem>>) attributes {dimension_semantics = [#tpu.dimension_semantics<parallel>, #tpu.dimension_semantics<parallel>], iteration_bounds = array<i64: 2, 1>, scalar_prefetch = 0 : i64, scratch_operands = 0 : i64, tpu.core_type = #tpu.core_type<tc>, window_params = [{transform_indices = @transform_0, window_bounds = array<i64: 1, 16, 64>}, {pipeline_mode = #tpu.pipeline_mode<synchronous>, transform_indices = @transform_1, window_bounds = array<i64: 12, 16>}, {pipeline_mode = #tpu.pipeline_mode<synchronous>, transform_indices = @transform_2, window_bounds = array<i64: 12, 1>}, {pipeline_mode = #tpu.pipeline_mode<synchronous>, transform_indices = @transform_3, window_bounds = array<i64: 8, 4>}, {pipeline_mode = #tpu.pipeline_mode<synchronous>, transform_indices = @transform_4, window_bounds = array<i64: 8, 1>}, {transform_indices = @transform_5, window_bounds = array<i64: 1, 8, 64>}, {transform_indices = @transform_6, window_bounds = array<i64: 1, 8, 64>}]} {
    %c0 = arith.constant 0 : index
    %c0_0 = arith.constant 0 : index
    %c0_1 = arith.constant 0 : index
    %0 = vector.load %arg2[%c0, %c0_0, %c0_1] : memref<1x16x64xf32, #tpu.memory_space<vmem>>, vector<1x16x64xf32>
    %1 = vector.shape_cast %0 : vector<1x16x64xf32> to vector<16x64xf32>
    %c0_2 = arith.constant 0 : index
    %c0_3 = arith.constant 0 : index
    %2 = vector.load %arg3[%c0_2, %c0_3] : memref<12x16xf32, #tpu.memory_space<vmem>>, vector<12x16xf32>
    %cst = arith.constant dense<0.000000e+00> : vector<12x64xf32>
    %3 = tpu.matmul %2, %1, %cst {dimension_numbers = #tpu.dot_dimension_numbers<[1], [0], [0], [1], [0, 0, 1, 1], [], []>} : vector<12x16xf32>, vector<16x64xf32>, vector<12x64xf32> -> vector<12x64xf32>
    %c0_4 = arith.constant 0 : index
    %c0_5 = arith.constant 0 : index
    %4 = vector.load %arg4[%c0_4, %c0_5] : memref<12x1xf32, #tpu.memory_space<vmem>>, vector<12x1xf32>
    %5 = vector.broadcast %4 : vector<12x1xf32> to vector<12x64xf32>
    %6 = arith.addf %3, %5 : vector<12x64xf32>
    %cst_6 = arith.constant 0.000000e+00 : f32
    %7 = vector.broadcast %cst_6 : f32 to vector<12x64xf32>
    %8 = arith.maximumf %6, %7 : vector<12x64xf32>
    %9 = vector.extract_strided_slice %8 {offsets = [0, 0], sizes = [8, 64], strides = [1, 1]} : vector<12x64xf32> to vector<8x64xf32>
    %c0_7 = arith.constant 0 : index
    %c0_8 = arith.constant 0 : index
    %c0_9 = arith.constant 0 : index
    %10 = vector.load %arg7[%c0_7, %c0_8, %c0_9] : memref<1x8x64xf32, #tpu.memory_space<vmem>>, vector<1x8x64xf32>
    %11 = vector.shape_cast %10 : vector<1x8x64xf32> to vector<8x64xf32>
    %12 = vector.shape_cast %9 : vector<8x64xf32> to vector<1x8x64xf32>
    tpu.vector_store %arg7[%c0_7, %c0_8, %c0_9], %12 {strides = array<i32>} : memref<1x8x64xf32, #tpu.memory_space<vmem>>, vector<1x8x64xf32>,
    %13 = vector.extract_strided_slice %8 {offsets = [8, 0], sizes = [4, 64], strides = [1, 1]} : vector<12x64xf32> to vector<4x64xf32>
    %c0_10 = arith.constant 0 : index
    %c0_11 = arith.constant 0 : index
    %14 = vector.load %arg5[%c0_10, %c0_11] : memref<8x4xf32, #tpu.memory_space<vmem>>, vector<8x4xf32>
    %cst_12 = arith.constant dense<0.000000e+00> : vector<8x64xf32>
    %15 = tpu.matmul %14, %13, %cst_12 {dimension_numbers = #tpu.dot_dimension_numbers<[1], [0], [0], [1], [0, 0, 1, 1], [], []>} : vector<8x4xf32>, vector<4x64xf32>, vector<8x64xf32> -> vector<8x64xf32>
    %c0_13 = arith.constant 0 : index
    %c0_14 = arith.constant 0 : index
    %16 = vector.load %arg6[%c0_13, %c0_14] : memref<8x1xf32, #tpu.memory_space<vmem>>, vector<8x1xf32>
    %17 = vector.broadcast %16 : vector<8x1xf32> to vector<8x64xf32>
    %18 = arith.addf %15, %17 : vector<8x64xf32>
    %cst_15 = arith.constant 0.000000e+00 : f32
    %19 = vector.broadcast %cst_15 : f32 to vector<8x64xf32>
    %20 = arith.maximumf %18, %19 : vector<8x64xf32>
    %c0_16 = arith.constant 0 : index
    %c0_17 = arith.constant 0 : index
    %c0_18 = arith.constant 0 : index
    %21 = vector.load %arg8[%c0_16, %c0_17, %c0_18] : memref<1x8x64xf32, #tpu.memory_space<vmem>>, vector<1x8x64xf32>
    %22 = vector.shape_cast %21 : vector<1x8x64xf32> to vector<8x64xf32>
    %23 = vector.shape_cast %20 : vector<8x64xf32> to vector<1x8x64xf32>
    tpu.vector_store %arg8[%c0_16, %c0_17, %c0_18], %23 {strides = array<i32>} : memref<1x8x64xf32, #tpu.memory_space<vmem>>, vector<1x8x64xf32>,
    return
  }
  func.func @transform_0(%arg0: i32, %arg1: i32) -> (i32, i32, i32) {
    %c0_i32 = arith.constant 0 : i32
    %c0_i32_0 = arith.constant 0 : i32
    return %arg0, %c0_i32, %arg1 : i32, i32, i32
  }
  func.func @transform_1(%arg0: i32, %arg1: i32) -> (i32, i32) {
    %c0_i32 = arith.constant 0 : i32
    %c0_i32_0 = arith.constant 0 : i32
    %c0_i32_1 = arith.constant 0 : i32
    return %c0_i32, %c0_i32_0 : i32, i32
  }
  func.func @transform_2(%arg0: i32, %arg1: i32) -> (i32, i32) {
    %c0_i32 = arith.constant 0 : i32
    %c0_i32_0 = arith.constant 0 : i32
    %c0_i32_1 = arith.constant 0 : i32
    return %c0_i32, %c0_i32_0 : i32, i32
  }
  func.func @transform_3(%arg0: i32, %arg1: i32) -> (i32, i32) {
    %c0_i32 = arith.constant 0 : i32
    %c0_i32_0 = arith.constant 0 : i32
    %c0_i32_1 = arith.constant 0 : i32
    return %c0_i32, %c0_i32_0 : i32, i32
  }
  func.func @transform_4(%arg0: i32, %arg1: i32) -> (i32, i32) {
    %c0_i32 = arith.constant 0 : i32
    %c0_i32_0 = arith.constant 0 : i32
    %c0_i32_1 = arith.constant 0 : i32
    return %c0_i32, %c0_i32_0 : i32, i32
  }
  func.func @transform_5(%arg0: i32, %arg1: i32) -> (i32, i32, i32) {
    %c0_i32 = arith.constant 0 : i32
    %c0_i32_0 = arith.constant 0 : i32
    return %arg0, %c0_i32, %arg1 : i32, i32, i32
  }
  func.func @transform_6(%arg0: i32, %arg1: i32) -> (i32, i32, i32) {
    %c0_i32 = arith.constant 0 : i32
    %c0_i32_0 = arith.constant 0 : i32
    return %arg0, %c0_i32, %arg1 : i32, i32, i32
  }
}

</mosaic_0001>

<llo_original>
// kernel: tpu_custom_call.1
$region0: #{tpu_custom_call.1}
  #allocation0 [shape = 'u32[]', space=smem, size = 0x4, offset = 0x4, fixed_abs, tag = 'smem constant byte address 0x4 - core index']
  #allocation1 [shape = 'u32[144,128]{1,0:T(1,128)}', space=vmem, size = 0x12000, scoped, tag = 'internal scratch']
  %s0 = inlined_call_operand.vmem [shape: f32[2,16,64], index: 0, kind: input, shape index: {}]
  %s1 = inlined_call_operand.hbm [shape: f32[12,16], index: 1, kind: input, shape index: {}]
  %s2 = inlined_call_operand.vmem [shape: f32[12,1], index: 2, kind: input, shape index: {}]
  %s3 = inlined_call_operand.vmem [shape: f32[8,4], index: 3, kind: input, shape index: {}]
  %s4 = inlined_call_operand.vmem [shape: f32[8,1], index: 4, kind: input, shape index: {}]
  %s5 = inlined_call_operand.hbm [shape: f32[2,8,64], index: 5, kind: output, shape index: {0}]
  %s6 = inlined_call_operand.hbm [shape: f32[2,8,64], index: 6, kind: output, shape index: {1}]
  %7 = xla_tuple %s5, %s6
  %s8 = sld [smem:[#allocation0]]
  $region65: #{tpu_custom_call.1} parent=0
    _
  %s10 = ssub.s32 1, %s8
  %s11 = scalar_select 0, %s10, %s8
  $region1: #{tpu_custom_call.1} parent=0
    #allocation2 [shape = 'u8[8192]{0}', space=vmem, size = 0x2000, scoped, tag = 'input window, operand 1, single buffered']
    #allocation3 [shape = 's32[2]{0}', space=sflag, size = 0x8, scoped, tag = 'scoped memory for tpu_custom_call.1']
    #allocation4 [shape = 's32[2]{0}', space=sflag, size = 0x8, scoped, tag = 'scoped memory for tpu_custom_call.1']
    #allocation5 [shape = 'u8[8192]{0}', space=vmem, size = 0x2000, scoped, tag = 'output window, operand 0']
    #allocation6 [shape = 'u8[8192]{0}', space=vmem, size = 0x2000, scoped, tag = 'output window, operand 1']
    #allocation7 [shape = 's32[2]{0}', space=sflag, size = 0x8, scoped, tag = 'scoped memory for tpu_custom_call.1']
    %12 = vsyncpa [#allocation3], 0
    %13 = vsyncpa [#allocation4], 0
    %s14 = scalar_lea.sflag [#allocation4], 1
    %15 = vsyncpa %s14, 0
    %16 = vsyncpa [#allocation7], 0
    %s17 = scalar_lea.sflag [#allocation7], 1
    %18 = vsyncpa %s17, 0
    loop: start=0, step=1, limit=4
    $region2: #{tpu_custom_call.1} parent=1 // loop_pre_header
      _
    $region3: #{tpu_custom_call.1} parent=1 // loop_header
      %s20 = sphi 0, %s24
      %p21 = scmp.ge.s32.totalorder %s20, 4
      %s27 = sphi 0, %s39
      %s28 = sphi 0, %s35
      %s29 = sphi 0, %s27
      %s30 = sphi 0, %s28
      %s31 = sphi 0, %s29
      %s32 = sphi 0, %s30
      %s44 = sphi 0, %s46
      %s47 = sphi 0, %s44
      %s48 = sphi 0, %s47
      %s64 = sphi 0, %s48
      %s68 = sphi 0, %s68
      %s70 = sphi 0, %s68
      %s71 = sphi 0, %s70
      %s85 = sphi 0, %s71
      %s89 = sphi 0, %s89
      %s91 = sphi 0, %s89
      %s92 = sphi 0, %s91
      %s106 = sphi 0, %s92
      %s110 = sphi 0, %s110
      %s112 = sphi 0, %s110
      %s113 = sphi 0, %s112
      %s127 = sphi 0, %s113
      %s131 = sphi 0, %s131
      %s133 = sphi 0, %s131
      %s134 = sphi 0, %s133
      %s148 = sphi 0, %s134
      %s156 = sphi 0, %s158
      %s159 = sphi 0, %s156
      %s160 = sphi 0, %s159
      %s176 = sphi 0, %s160
      %s184 = sphi 0, %s186
      %s187 = sphi 0, %s184
      %s188 = sphi 0, %s187
      %s204 = sphi 0, %s188
    $region4: #{tpu_custom_call.1} parent=1 // loop_header_branch
      %23 = sbr.rel (%p21) target = $region8
    $region5: #{tpu_custom_call.1} parent=1 // loop_body
      %s25 = ssub.s32 %s20, 1
      %s26 = ssub.s32 %s20, 2
      %s33 = sadd.s32 1, %s28
      %p34 = scmp.ge.s32.totalorder %s33, 1
      %s35 = scalar_select %p34, 0, %s33
      %s36 = sadd.s32 1, %s27
      %s37 = scalar_select %p34, %s36, %s27
      %p38 = scmp.ge.s32.totalorder %s37, 2
      %s39 = scalar_select %p38, 0, %s37
      %s40 = ssub.s32 %s27, %s39
      %s41 = ssub.s32 %s28, %s35
      %s42 = sor.u32 %s40, %s41
      %p43 = scmp.eq.s32.totalorder %s42, 0
      %s45 = sadd.s32 %s44, 1
      %s46 = scalar_select %p43, %s44, %s45
      %p49 = pneg %p43
      %p50 = scmp.eq.s32.totalorder %s20, 1
      %p51 = por %p49, %p50
      %p52 = scmp.ne.s32.totalorder %s44, %s47
      %p53 = scmp.eq.s32.totalorder %s20, 0
      %p54 = por %p52, %p53
      %p55 = scmp.ne.s32.totalorder %s44, %s47
      %p56 = scmp.eq.s32.totalorder %s25, 1
      %p57 = por %p55, %p56
      %p58 = scmp.ne.s32.totalorder %s47, %s48
      %p59 = scmp.eq.s32.totalorder %s25, 0
      %p60 = por %p58, %p59
      %p61 = scmp.ne.s32.totalorder %s47, %s48
      %p62 = scmp.eq.s32.totalorder %s26, 1
      %p63 = por %p61, %p62
      %p65 = scmp.ne.s32.totalorder %s48, %s64
      %p66 = scmp.eq.s32.totalorder %s26, 0
      %p67 = por %p65, %p66
      %s69 = sadd.s32 %s68, 1
      %p72 = scmp.eq.s32.totalorder %s20, 1
      %p73 = scmp.ne.s32.totalorder %s68, %s70
      %p74 = scmp.eq.s32.totalorder %s20, 0
      %p75 = por %p73, %p74
      %p76 = scmp.ne.s32.totalorder %s68, %s70
      %p77 = scmp.eq.s32.totalorder %s25, 1
      %p78 = por %p76, %p77
      %p79 = scmp.ne.s32.totalorder %s70, %s71
      %p80 = scmp.eq.s32.totalorder %s25, 0
      %p81 = por %p79, %p80
      %p82 = scmp.ne.s32.totalorder %s70, %s71
      %p83 = scmp.eq.s32.totalorder %s26, 1
      %p84 = por %p82, %p83
      %p86 = scmp.ne.s32.totalorder %s71, %s85
      %p87 = scmp.eq.s32.totalorder %s26, 0
      %p88 = por %p86, %p87
      %s90 = sadd.s32 %s89, 1
      %p93 = scmp.eq.s32.totalorder %s20, 1
      %p94 = scmp.ne.s32.totalorder %s89, %s91
      %p95 = scmp.eq.s32.totalorder %s20, 0
      %p96 = por %p94, %p95
      %p97 = scmp.ne.s32.totalorder %s89, %s91
      %p98 = scmp.eq.s32.totalorder %s25, 1
      %p99 = por %p97, %p98
      %p100 = scmp.ne.s32.totalorder %s91, %s92
      %p101 = scmp.eq.s32.totalorder %s25, 0
      %p102 = por %p100, %p101
      %p103 = scmp.ne.s32.totalorder %s91, %s92
      %p104 = scmp.eq.s32.totalorder %s26, 1
      %p105 = por %p103, %p104
      %p107 = scmp.ne.s32.totalorder %s92, %s106
      %p108 = scmp.eq.s32.totalorder %s26, 0
      %p109 = por %p107, %p108
      %s111 = sadd.s32 %s110, 1
      %p114 = scmp.eq.s32.totalorder %s20, 1
      %p115 = scmp.ne.s32.totalorder %s110, %s112
      %p116 = scmp.eq.s32.totalorder %s20, 0
      %p117 = por %p115, %p116
      %p118 = scmp.ne.s32.totalorder %s110, %s112
      %p119 = scmp.eq.s32.totalorder %s25, 1
      %p120 = por %p118, %p119
      %p121 = scmp.ne.s32.totalorder %s112, %s113
      %p122 = scmp.eq.s32.totalorder %s25, 0
      %p123 = por %p121, %p122
      %p124 = scmp.ne.s32.totalorder %s112, %s113
      %p125 = scmp.eq.s32.totalorder %s26, 1
      %p126 = por %p124, %p125
      %p128 = scmp.ne.s32.totalorder %s113, %s127
      %p129 = scmp.eq.s32.totalorder %s26, 0
      %p130 = por %p128, %p129
      %s132 = sadd.s32 %s131, 1
      %p135 = scmp.eq.s32.totalorder %s20, 1
      %p136 = scmp.ne.s32.totalorder %s131, %s133
      %p137 = scmp.eq.s32.totalorder %s20, 0
      %p138 = por %p136, %p137
      %p139 = scmp.ne.s32.totalorder %s131, %s133
      %p140 = scmp.eq.s32.totalorder %s25, 1
      %p141 = por %p139, %p140
      %p142 = scmp.ne.s32.totalorder %s133, %s134
      %p143 = scmp.eq.s32.totalorder %s25, 0
      %p144 = por %p142, %p143
      %p145 = scmp.ne.s32.totalorder %s133, %s134
      %p146 = scmp.eq.s32.totalorder %s26, 1
      %p147 = por %p145, %p146
      %p149 = scmp.ne.s32.totalorder %s134, %s148
      %p150 = scmp.eq.s32.totalorder %s26, 0
      %p151 = por %p149, %p150
      %s152 = ssub.s32 %s27, %s39
      %s153 = ssub.s32 %s28, %s35
      %s154 = sor.u32 %s152, %s153
      %p155 = scmp.eq.s32.totalorder %s154, 0
      %s157 = sadd.s32 %s156, 1
      %s158 = scalar_select %p155, %s156, %s157
      %p161 = pneg %p155
      %p162 = scmp.eq.s32.totalorder %s20, 1
      %p163 = por %p161, %p162
      %p164 = scmp.ne.s32.totalorder %s156, %s159
      %p165 = scmp.eq.s32.totalorder %s20, 0
      %p166 = por %p164, %p165
      %p167 = scmp.ne.s32.totalorder %s156, %s159
      %p168 = scmp.eq.s32.totalorder %s25, 1
      %p169 = por %p167, %p168
      %p170 = scmp.ne.s32.totalorder %s159, %s160
      %p171 = scmp.eq.s32.totalorder %s25, 0
      %p172 = por %p170, %p171
      %p173 = scmp.ne.s32.totalorder %s159, %s160
      %p174 = scmp.eq.s32.totalorder %s26, 1
      %p175 = por %p173, %p174
      %p177 = scmp.ne.s32.totalorder %s160, %s176
      %p178 = scmp.eq.s32.totalorder %s26, 0
      %p179 = por %p177, %p178
      %s180 = ssub.s32 %s27, %s39
      %s181 = ssub.s32 %s28, %s35
      %s182 = sor.u32 %s180, %s181
      %p183 = scmp.eq.s32.totalorder %s182, 0
      %s185 = sadd.s32 %s184, 1
      %s186 = scalar_select %p183, %s184, %s185
      %p189 = pneg %p183
      %p190 = scmp.eq.s32.totalorder %s20, 1
      %p191 = por %p189, %p190
      %p192 = scmp.ne.s32.totalorder %s184, %s187
      %p193 = scmp.eq.s32.totalorder %s20, 0
      %p194 = por %p192, %p193
      %p195 = scmp.ne.s32.totalorder %s184, %s187
      %p196 = scmp.eq.s32.totalorder %s25, 1
      %p197 = por %p195, %p196
      %p198 = scmp.ne.s32.totalorder %s187, %s188
      %p199 = scmp.eq.s32.totalorder %s25, 0
      %p200 = por %p198, %p199
      %p201 = scmp.ne.s32.totalorder %s187, %s188
      %p202 = scmp.eq.s32.totalorder %s26, 1
      %p203 = por %p201, %p202
      %p205 = scmp.ne.s32.totalorder %s188, %s204
      %p206 = scmp.eq.s32.totalorder %s26, 0
      %p207 = por %p205, %p206
      %p208 = scmp.le.s32.totalorder 1, %s20
      %p209 = scmp.lt.s32.totalorder %s20, 3
      %p210 = pnand %p208, %p209
      %p211 = pneg %p210
      // Predicated region
      $region9: #{tpu_custom_call.1} parent=5 // pred_check
        _
      $region10: #{tpu_custom_call.1} parent=5 // pred_check_branch
        %213 = sbr.rel (%p210) target = $region12
      $region11: #{tpu_custom_call.1} parent=5 // pred_region
        %s214 = ssub.s32 %s20, 1
        // Predicated region
        $region13: #{tpu_custom_call.1} parent=11 // pred_check
          %p215 = pneg %p81
        $region14: #{tpu_custom_call.1} parent=11 // pred_check_branch
          %217 = sbr.rel (%p215) target = $region16
        $region15: #{tpu_custom_call.1} parent=11 // pred_region
          %s219 = ssub.s32 256, 256
          %220 = vsyncadd [#allocation3], %s219
          %s221 = sshll.u32 [#allocation2], 4
          %s222 = int_to_ptr.vmem [resolvable:$true] %s221
          %227 = dma.hbm_to_vmem [thread:$0]  %s1, 256, %s222, [#allocation3], 128, 128, 8
        $region16: #{tpu_custom_call.1} parent=11 // pred_fallthru
          _
        // Predicated region
        $region17: #{tpu_custom_call.1} parent=11 // pred_check
          %p228 = pneg %p102
        $region18: #{tpu_custom_call.1} parent=11 // pred_check_branch
          %230 = sbr.rel (%p228) target = $region20
        $region19: #{tpu_custom_call.1} parent=11 // pred_region
          _
        $region20: #{tpu_custom_call.1} parent=11 // pred_fallthru
          _
        // Predicated region
        $region21: #{tpu_custom_call.1} parent=11 // pred_check
          %p231 = pneg %p123
        $region22: #{tpu_custom_call.1} parent=11 // pred_check_branch
          %233 = sbr.rel (%p231) target = $region24
        $region23: #{tpu_custom_call.1} parent=11 // pred_region
          _
        $region24: #{tpu_custom_call.1} parent=11 // pred_fallthru
          _
        // Predicated region
        $region25: #{tpu_custom_call.1} parent=11 // pred_check
          %p234 = pneg %p144
        $region26: #{tpu_custom_call.1} parent=11 // pred_check_branch
          %236 = sbr.rel (%p234) target = $region28
        $region27: #{tpu_custom_call.1} parent=11 // pred_region
          _
        $region28: #{tpu_custom_call.1} parent=11 // pred_fallthru
          _
      $region12: #{tpu_custom_call.1} parent=5 // pred_fallthru
        _
      %p237 = scmp.lt.s32.totalorder %s20, 2
      // Predicated region
      $region29: #{tpu_custom_call.1} parent=5 // pred_check
        %p238 = pneg %p237
      $region30: #{tpu_custom_call.1} parent=5 // pred_check_branch
        %240 = sbr.rel (%p238) target = $region32
      $region31: #{tpu_custom_call.1} parent=5 // pred_region
        // Predicated region
        $region33: #{tpu_custom_call.1} parent=31 // pred_check
          %p241 = pneg %p54
        $region34: #{tpu_custom_call.1} parent=31 // pred_check_branch
          %243 = sbr.rel (%p241) target = $region36
        $region35: #{tpu_custom_call.1} parent=31 // pred_region
          %p244 = scmp.lt.s32.totalorder %s27, 1
          %s245 = scalar_select %p244, %s27, 1
          %p246 = scmp.lt.s32.totalorder %s28, 0
          %s247 = scalar_select %p246, %s28, 0
          %s248 = smul.addr %s245, 2
          %s249 = sadd.s32 %s247, %s248
          %s250 = smul.addr %s249, 8
          %s251 = scalar_lea.vmem %s0, %s250
        $region36: #{tpu_custom_call.1} parent=31 // pred_fallthru
          _
      $region32: #{tpu_custom_call.1} parent=5 // pred_fallthru
        _
      %p252 = scmp.le.s32.totalorder 1, %s20
      %p253 = scmp.lt.s32.totalorder %s20, 3
      %p254 = pnand %p252, %p253
      %p255 = pneg %p254
      // Predicated region
      $region37: #{tpu_custom_call.1} parent=5 // pred_check
        _
      $region38: #{tpu_custom_call.1} parent=5 // pred_check_branch
        %257 = sbr.rel (%p254) target = $region40
      $region39: #{tpu_custom_call.1} parent=5 // pred_region
        %s258 = ssub.s32 %s20, 1
        // Predicated region
        $region41: #{tpu_custom_call.1} parent=39 // pred_check
          %p259 = pneg %p81
        $region42: #{tpu_custom_call.1} parent=39 // pred_check_branch
          %261 = sbr.rel (%p259) target = $region44
        $region43: #{tpu_custom_call.1} parent=39 // pred_region
          %262 = dma.done [#allocation3], 256
        $region44: #{tpu_custom_call.1} parent=39 // pred_fallthru
          _
        %p263 = scmp.lt.s32.totalorder %s29, 1
        %s264 = scalar_select %p263, %s29, 1
        %p265 = scmp.lt.s32.totalorder %s30, 0
        %s266 = scalar_select %p265, %s30, 0
        %s267 = smul.addr %s264, 2
        %s268 = sadd.s32 %s266, %s267
        %s269 = smul.addr %s268, 8
        %s270 = scalar_lea.vmem %s0, %s269
        %p271 = pneg %p60
        %p272 = pneg %p57
        %p273 = pneg %p81
        %p274 = pneg %p78
        %p275 = pneg %p102
        %p276 = pneg %p99
        %p277 = pneg %p123
        %p278 = pneg %p120
        %p279 = pneg %p144
        %p280 = pneg %p141
        %p281 = pneg %p172
        %p282 = pneg %p169
        %s283 = sand.u32 %s159, 1
        %s284 = scalar_lea.sflag [#allocation4], %s283
        %s285 = sand.u32 %s159, 1
        %s286 = smul.addr %s285, 8
        %s287 = scalar_lea.vmem [#allocation5], %s286
        %p288 = pneg %p200
        %p289 = pneg %p197
        %s290 = sand.u32 %s187, 1
        %s291 = scalar_lea.sflag [#allocation7], %s290
        %s292 = sand.u32 %s187, 1
        %s293 = smul.addr %s292, 8
        %s294 = scalar_lea.vmem [#allocation6], %s293
        %p295 = scmp.lt.s32.totalorder %s29, 1
        %s296 = scalar_select %p295, %s29, 1
        %p297 = scmp.lt.s32.totalorder %s30, 0
        %s298 = scalar_select %p297, %s30, 0
        %s299 = smul.addr %s296, 2
        %s300 = sadd.s32 %s298, %s299
        %s301 = smul.addr %s300, 8
        %s302 = scalar_lea.vmem %s0, %s301
        %v303 = vld [vmem:[%s302] sm:$0xff]
        %v304 = vld [vmem:[%s302 + $0x8] sm:$0xff]
        %v305 = vld [vmem:[#allocation2] sm:$0xff]
        %v306 = vld [vmem:[#allocation2 + $0x8] sm:$0xf]
        %v307 = vld [vmem:[%s2] sm:$0xff]
        %v308 = vld [vmem:[%s2 + $0x8] sm:$0xf]
        %310 = vset.pattern.permute.xlu0 0
        %311 = vperm.xlu0 %310, %v307
        %v312 = vpop.permute.xlu0 %311
        %315 = vset.pattern.permute.xlu0 0
        %316 = vperm.xlu0 %315, %v308
        %v317 = vpop.permute.xlu0 %316
        %vm319 = vcmask 130048
        %v321 = vsel %vm319, %v305, 0
        %v324 = vsel %vm319, %v306, 0
        %326 = vmatprep.subr.mxu0 0.0
        %327 = vmatpush1.msra.mxu0 %v303
        %328 = vmatprep.subr.mxu0 0.0
        %329 = vmatpush1.msra.mxu0 %v304
        %330 = vmatprep.subr.mxu0 0.0
        %331 = vmatpush1.msra.mxu0 0.0
        %332 = vmatprep.subr.mxu0 0.0
        %333 = vmatpush1.msra.mxu0 0.0
        %334 = vmatprep.subr.mxu0 0.0
        %335 = vmatpush1.msra.mxu0 0.0
        %336 = vmatprep.subr.mxu0 0.0
        %337 = vmatpush1.msra.mxu0 0.0
        %338 = vmatprep.subr.mxu0 0.0
        %339 = vmatpush1.msra.mxu0 0.0
        %340 = vmatprep.subr.mxu0 0.0
        %341 = vmatpush1.msra.mxu0 0.0
        %342 = vmatprep.subr.mxu0 0.0
        %343 = vmatpush1.msra.mxu0 0.0
        %344 = vmatprep.subr.mxu0 0.0
        %345 = vmatpush1.msra.mxu0 0.0
        %346 = vmatprep.subr.mxu0 0.0
        %347 = vmatpush1.msra.mxu0 0.0
        %348 = vmatprep.subr.mxu0 0.0
        %349 = vmatpush1.msra.mxu0 0.0
        %350 = vmatprep.subr.mxu0 0.0
        %351 = vmatpush1.msra.mxu0 0.0
        %352 = vmatprep.subr.mxu0 0.0
        %353 = vmatpush1.msra.mxu0 0.0
        %354 = vmatprep.subr.mxu0 0.0
        %355 = vmatpush1.msra.mxu0 0.0
        %356 = vmatprep.subr.mxu0 0.0
        %357 = vmatpush1.msra.mxu0 0.0
        %358 = vmatprep.subr.mxu0 0.0
        %359 = vmatpush1.msra.mxu0 0.0
        %360 = vmatprep.subr.mxu0 0.0
        %361 = vmatpush1.msra.mxu0 0.0
        %362 = vmatprep.subr.mxu0 0.0
        %363 = vmatpush1.msra.mxu0 0.0
        %364 = vmatprep.subr.mxu0 0.0
        %365 = vmatpush1.msra.mxu0 0.0
        %366 = vmatprep.subr.mxu0 0.0
        %367 = vmatpush1.msra.mxu0 0.0
        %368 = vmatprep.subr.mxu0 0.0
        %369 = vmatpush1.msra.mxu0 0.0
        %370 = vmatprep.subr.mxu0 0.0
        %371 = vmatpush1.msra.mxu0 0.0
        %372 = vmatprep.subr.mxu0 0.0
        %373 = vmatpush1.msra.mxu0 0.0
        %374 = vmatprep.subr.mxu0 0.0
        %375 = vmatpush1.msra.mxu0 0.0
        %376 = vmatprep.subr.mxu0 0.0
        %377 = vmatpush1.msra.mxu0 0.0
        %378 = vmatprep.subr.mxu0 0.0
        %379 = vmatpush1.msra.mxu0 0.0
        %380 = vmatprep.subr.mxu0 0.0
        %381 = vmatpush1.msra.mxu0 0.0
        %382 = vmatprep.subr.mxu0 0.0
        %383 = vmatpush1.msra.mxu0 0.0
        %384 = vmatprep.subr.mxu0 0.0
        %385 = vmatpush1.msra.mxu0 0.0
        %386 = vmatprep.subr.mxu0 0.0
        %387 = vmatpush1.msra.mxu0 0.0
        %388 = vmatprep.subr.mxu0 0.0
        %389 = vmatpush1.msra.mxu0 0.0
        %390 = vmatprep.mubr.f32.mxu0 0.0
        %391 = vmatmul.mubr.f32.gmra.mrb[0].mxu0 %v321
        %v392 = vpop.f32.mrb[0].mxu0
        %v393 = vadd.f32 %v312, %v392
        %v394 = vpop.f32.mrb[0].mxu0
        %395 = vmatprep.mubr.f32.mxu0 0.0
        %396 = vmatmul.mubr.f32.gmra.mrb[0].mxu0 %v324
        %v397 = vpop.f32.mrb[0].mxu0
        %v398 = vadd.f32 %v317, %v397
        %v399 = vpop.f32.mrb[0].mxu0
        %400 = vdwg.mxu0
        %v401 = vmax.f32 %v393, 0.0
        %v402 = vmax.f32 %v398, 0.0
        %vm403 = vcmask 523264
        %404 = vst.msk [vmem:[%s287] sm:$0xff] %vm403, %v401
        %v405 = vld [vmem:[%s3] sm:$0xff]
        %v406 = vld [vmem:[%s4] sm:$0xff]
        %408 = vset.pattern.permute.xlu0 0
        %409 = vperm.xlu0 %408, %v406
        %v410 = vpop.permute.xlu0 %409
        %vm412 = vcmask 31744
        %v414 = vsel %vm412, %v405, 0
        %vm416 = vcmask 1043456
        %v418 = vsel %vm416, %v402, 0
        %420 = vmatprep.subr.mxu0 0.0
        %421 = vmatpush1.msra.mxu0 %v418
        %422 = vmatprep.subr.mxu0 0.0
        %423 = vmatpush1.msra.mxu0 0.0
        %424 = vmatprep.subr.mxu0 0.0
        %425 = vmatpush1.msra.mxu0 0.0
        %426 = vmatprep.subr.mxu0 0.0
        %427 = vmatpush1.msra.mxu0 0.0
        %428 = vmatprep.subr.mxu0 0.0
        %429 = vmatpush1.msra.mxu0 0.0
        %430 = vmatprep.subr.mxu0 0.0
        %431 = vmatpush1.msra.mxu0 0.0
        %432 = vmatprep.subr.mxu0 0.0
        %433 = vmatpush1.msra.mxu0 0.0
        %434 = vmatprep.subr.mxu0 0.0
        %435 = vmatpush1.msra.mxu0 0.0
        %436 = vmatprep.subr.mxu0 0.0
        %437 = vmatpush1.msra.mxu0 0.0
        %438 = vmatprep.subr.mxu0 0.0
        %439 = vmatpush1.msra.mxu0 0.0
        %440 = vmatprep.subr.mxu0 0.0
        %441 = vmatpush1.msra.mxu0 0.0
        %442 = vmatprep.subr.mxu0 0.0
        %443 = vmatpush1.msra.mxu0 0.0
        %444 = vmatprep.subr.mxu0 0.0
        %445 = vmatpush1.msra.mxu0 0.0
        %446 = vmatprep.subr.mxu0 0.0
        %447 = vmatpush1.msra.mxu0 0.0
        %448 = vmatprep.subr.mxu0 0.0
        %449 = vmatpush1.msra.mxu0 0.0
        %450 = vmatprep.subr.mxu0 0.0
        %451 = vmatpush1.msra.mxu0 0.0
        %452 = vmatprep.subr.mxu0 0.0
        %453 = vmatpush1.msra.mxu0 0.0
        %454 = vmatprep.subr.mxu0 0.0
        %455 = vmatpush1.msra.mxu0 0.0
        %456 = vmatprep.subr.mxu0 0.0
        %457 = vmatpush1.msra.mxu0 0.0
        %458 = vmatprep.subr.mxu0 0.0
        %459 = vmatpush1.msra.mxu0 0.0
        %460 = vmatprep.subr.mxu0 0.0
        %461 = vmatpush1.msra.mxu0 0.0
        %462 = vmatprep.subr.mxu0 0.0
        %463 = vmatpush1.msra.mxu0 0.0
        %464 = vmatprep.subr.mxu0 0.0
        %465 = vmatpush1.msra.mxu0 0.0
        %466 = vmatprep.subr.mxu0 0.0
        %467 = vmatpush1.msra.mxu0 0.0
        %468 = vmatprep.subr.mxu0 0.0
        %469 = vmatpush1.msra.mxu0 0.0
        %470 = vmatprep.subr.mxu0 0.0
        %471 = vmatpush1.msra.mxu0 0.0
        %472 = vmatprep.subr.mxu0 0.0
        %473 = vmatpush1.msra.mxu0 0.0
        %474 = vmatprep.subr.mxu0 0.0
        %475 = vmatpush1.msra.mxu0 0.0
        %476 = vmatprep.subr.mxu0 0.0
        %477 = vmatpush1.msra.mxu0 0.0
        %478 = vmatprep.subr.mxu0 0.0
        %479 = vmatpush1.msra.mxu0 0.0
        %480 = vmatprep.subr.mxu0 0.0
        %481 = vmatpush1.msra.mxu0 0.0
        %482 = vmatprep.subr.mxu0 0.0
        %483 = vmatpush1.msra.mxu0 0.0
        %484 = vmatprep.mubr.f32.mxu0 0.0
        %485 = vmatmul.mubr.f32.gmra.mrb[0].mxu0 %v414
        %v486 = vpop.f32.mrb[0].mxu0
        %v487 = vadd.f32 %v410, %v486
        %v488 = vpop.f32.mrb[0].mxu0
        %489 = vdwg.mxu0
        %v490 = vmax.f32 %v487, 0.0
        %491 = vst.msk [vmem:[%s294] sm:$0xff] %vm403, %v490
        %s492 = sand.u32 %s159, 1
        %s493 = scalar_lea.sflag [#allocation4], %s492
        %s494 = sand.u32 %s159, 1
        %s495 = smul.addr %s494, 8
        %s496 = scalar_lea.vmem [#allocation5], %s495
        %s497 = sand.u32 %s187, 1
        %s498 = scalar_lea.sflag [#allocation7], %s497
        %s499 = sand.u32 %s187, 1
        %s500 = smul.addr %s499, 8
        %s501 = scalar_lea.vmem [#allocation6], %s500
        // Predicated region
        $region45: #{tpu_custom_call.1} parent=39 // pred_check
          %p502 = pneg %p169
        $region46: #{tpu_custom_call.1} parent=39 // pred_check_branch
          %504 = sbr.rel (%p502) target = $region48
        $region47: #{tpu_custom_call.1} parent=39 // pred_region
          %s506 = ssub.s32 128, 128
          %507 = vsyncadd %s493, %s506
          %s508 = sadd.s32 %s30, %s29
          %s509 = smul.addr %s508, 128
          %s510 = scalar_lea.hbm %s5, %s509
          %s512 = sshll.u32 %s496, 4
          %s513 = int_to_ptr.vmem [resolvable:$true] %s512
          %515 = dma.vmem_to_hbm [thread:$0]  %s513, 128, %s510, %s493
        $region48: #{tpu_custom_call.1} parent=39 // pred_fallthru
          _
        // Predicated region
        $region49: #{tpu_custom_call.1} parent=39 // pred_check
          %p516 = pneg %p197
        $region50: #{tpu_custom_call.1} parent=39 // pred_check_branch
          %518 = sbr.rel (%p516) target = $region52
        $region51: #{tpu_custom_call.1} parent=39 // pred_region
          %s520 = ssub.s32 128, 128
          %521 = vsyncadd %s498, %s520
          %s522 = sadd.s32 %s30, %s29
          %s523 = smul.addr %s522, 128
          %s524 = scalar_lea.hbm %s6, %s523
          %s526 = sshll.u32 %s501, 4
          %s527 = int_to_ptr.vmem [resolvable:$true] %s526
          %529 = dma.vmem_to_hbm [thread:$0]  %s527, 128, %s524, %s498
        $region52: #{tpu_custom_call.1} parent=39 // pred_fallthru
          _
      $region40: #{tpu_custom_call.1} parent=5 // pred_fallthru
        _
      %p530 = scmp.le.s32.totalorder 2, %s20
      // Predicated region
      $region53: #{tpu_custom_call.1} parent=5 // pred_check
        %p531 = pneg %p530
      $region54: #{tpu_custom_call.1} parent=5 // pred_check_branch
        %533 = sbr.rel (%p531) target = $region56
      $region55: #{tpu_custom_call.1} parent=5 // pred_region
        %s534 = ssub.s32 %s20, 2
        // Predicated region
        $region57: #{tpu_custom_call.1} parent=55 // pred_check
          %p535 = pneg %p175
        $region58: #{tpu_custom_call.1} parent=55 // pred_check_branch
          %537 = sbr.rel (%p535) target = $region60
        $region59: #{tpu_custom_call.1} parent=55 // pred_region
          %s538 = sand.u32 %s160, 1
          %s539 = scalar_lea.sflag [#allocation4], %s538
          %s540 = sand.u32 %s160, 1
          %s541 = smul.addr %s540, 8
          %s542 = scalar_lea.vmem [#allocation5], %s541
          %543 = dma.done %s539, 128
        $region60: #{tpu_custom_call.1} parent=55 // pred_fallthru
          _
        // Predicated region
        $region61: #{tpu_custom_call.1} parent=55 // pred_check
          %p544 = pneg %p203
        $region62: #{tpu_custom_call.1} parent=55 // pred_check_branch
          %546 = sbr.rel (%p544) target = $region64
        $region63: #{tpu_custom_call.1} parent=55 // pred_region
          %s547 = sand.u32 %s188, 1
          %s548 = scalar_lea.sflag [#allocation7], %s547
          %s549 = sand.u32 %s188, 1
          %s550 = smul.addr %s549, 8
          %s551 = scalar_lea.vmem [#allocation6], %s550
          %552 = dma.done %s548, 128
        $region64: #{tpu_custom_call.1} parent=55 // pred_fallthru
          _
      $region56: #{tpu_custom_call.1} parent=5 // pred_fallthru
        _
    $region6: #{tpu_custom_call.1} parent=1 // loop_footer
      %s24 = sadd.s32 1, %s20
    $region7: #{tpu_custom_call.1} parent=1 // loop_footer_branch
      %19 = sbr.rel target = $region3
    $region8: #{tpu_custom_call.1} parent=1 // loop_exit
      _
    %553 = vsyncpa [#allocation3], 1
    %s554 = scalar_lea.sflag [#allocation3], 1
    %555 = vsyncpa %s554, 1
    %556 = vsyncpa [#allocation4], 1
    %s557 = scalar_lea.sflag [#allocation4], 1
    %558 = vsyncpa %s557, 1
    %559 = vsyncpa [#allocation7], 1
    %s560 = scalar_lea.sflag [#allocation7], 1
    %561 = vsyncpa %s560, 1

</llo_original>
